<compile_context>
chip_gen: v7x
topology: tpu7x:2x2x1
jax: 0.10.0
libtpu: 0.0.40
codegen_flags: <defaults>
</compile_context>

<pallas_src>
import functools

import jax
import jax.numpy as jnp
import numpy as np
from jax.experimental import pallas as pl
from jax.experimental.pallas import tpu as pltpu


# ---------------------------------------------------------------------------
# Kernels
# ---------------------------------------------------------------------------

def _se_fused_kernel(x_ref, w1_ref, w2t_ref, o_ref, *, inv_n):
    """Whole problem resident in VMEM: mean -> excitation -> scale."""
    x = x_ref[...]                                                      # (N, C)
    m = jnp.sum(x.astype(jnp.float32), axis=0, keepdims=True) * inv_n   # (1, C)
    # Lane-dense VPU excitation (a (1,C)x(C,H) matmul would waste the MXU).
    h = jnp.sum(w1_ref[...].astype(jnp.float32) * m, axis=-1, keepdims=True)
    h = jnp.maximum(h, 0.0)                                             # (H, 1)
    y = jnp.sum(w2t_ref[...].astype(jnp.float32) * h, axis=0, keepdims=True)
    y = jax.nn.sigmoid(y).astype(x.dtype)                               # (1, C)
    o_ref[...] = x * y


def _se_partial_sum_kernel(x_ref, psum_ref, *, tile_n, n_rows):
    """Phase A: per-tile f32 column sum, written to row 0 of an (8, C) block."""
    i = pl.program_id(0)
    x = x_ref[...].astype(jnp.float32)                                  # (tile_n, C)
    # Ragged last tile: rows >= n_rows of the partial input block hold garbage.
    row = jax.lax.broadcasted_iota(jnp.int32, x.shape, 0) + i * tile_n
    x = jnp.where(row < n_rows, x, 0.0)
    s = jnp.sum(x, axis=0, keepdims=True)                               # (1, C)
    out_row = jax.lax.broadcasted_iota(jnp.int32, psum_ref.shape, 0)
    psum_ref[...] = jnp.where(out_row == 0, s, 0.0)                     # (8, C)


def _se_scale_kernel(x_ref, y_ref, o_ref):
    """Phase B: native-dtype broadcast scale. Partial output blocks at the
    array edge are masked by Pallas, so the ragged tail needs no handling."""
    o_ref[...] = x_ref[...] * y_ref[...]


# ---------------------------------------------------------------------------
# Sizing helpers (generation-aware)
# ---------------------------------------------------------------------------

def _vmem_limit_bytes():
    phys = None
    try:
        info = pltpu.get_tpu_info()
        for name in ("vmem_capacity_bytes", "vmem_size_bytes", "vmem_bytes"):
            v = getattr(info, name, None)
            if v:
                phys = int(v)
                break
    except Exception:
        phys = None
    if not phys:
        phys = 64 * 1024 * 1024            # conservative (v7x-sized VMEM)
    if phys <= 64 * 1024 * 1024:           # v7x: 64 MiB physical -> 48 MiB scoped
        return (phys * 3) // 4
    return phys // 2                       # v5e/v6e: 128 MiB physical -> 64 MiB


def _round8(r):
    return max(8, r - (r % 8))


def _pick_tiles(n, c, itemsize, vmem_limit):
    cap = max(8, (n // 8) * 8)             # never request a block taller than x
    # Phase A: double-buffered input tile + ~2 f32-sized in-kernel temps
    # (cast + mask); the (8, C) partial-sum output is negligible.
    rows_a = int(0.6 * vmem_limit) // ((2 * itemsize + 8) * c)
    # Phase B: 3-deep buffered input + output tiles (pl.Buffered(3)) + margin.
    rows_b = int(0.6 * vmem_limit) // ((6 * itemsize + 4) * c)
    tile_a = max(8, min(_round8(rows_a), cap))
    tile_b = max(8, min(_round8(rows_b), cap))
    return tile_a, tile_b


def _excitation(col_sum_f32, w1, w2, n, out_dtype):
    """(1,C) column sum -> sigmoid(relu(mean @ W1.T) @ W2.T), pure f32 VPU work."""
    m = col_sum_f32 * (1.0 / n)                                         # (1, C)
    w1f = w1.astype(jnp.float32)                                        # (H, C)
    w2tf = w2.astype(jnp.float32).T                                     # (H, C)
    h = jnp.maximum(jnp.sum(w1f * m, axis=-1, keepdims=True), 0.0)      # (H, 1)
    y = jax.nn.sigmoid(jnp.sum(w2tf * h, axis=0, keepdims=True))        # (1, C)
    return y.astype(out_dtype)


# ---------------------------------------------------------------------------
# Wrapper
# ---------------------------------------------------------------------------

def se_module(x, w1, w2, *, tile_n=None, fused=None):
    """x: (N, C); w1: (H, C) = Linear(C, H).weight; w2: (C, H) = Linear(H, C).weight."""
    N, C = x.shape
    H = w1.shape[0]
    dtype = x.dtype
    itemsize = jnp.dtype(dtype).itemsize
    vmem_limit = _vmem_limit_bytes()

    if fused is None:
        # in + out (double-buffered) + one f32-sized temp + weights must fit.
        fused_bytes = 4 * N * C * itemsize + 4 * N * C + 2 * H * C * 4
        fused = fused_bytes <= vmem_limit - (4 << 20)
    if N < 8:
        fused = True

    if fused:
        w2t = w2.T                                                      # (H, C)
        return pl.pallas_call(
            functools.partial(_se_fused_kernel, inv_n=1.0 / N),
            out_shape=jax.ShapeDtypeStruct((N, C), dtype),
            grid_spec=pltpu.PrefetchScalarGridSpec(
                num_scalar_prefetch=0,
                grid=(1,),
                in_specs=[
                    pl.BlockSpec((N, C), lambda i: (0, 0)),
                    pl.BlockSpec((H, C), lambda i: (0, 0)),
                    pl.BlockSpec((H, C), lambda i: (0, 0)),
                ],
                out_specs=pl.BlockSpec((N, C), lambda i: (0, 0)),
            ),
            compiler_params=pltpu.CompilerParams(
                dimension_semantics=("arbitrary",),
                vmem_limit_bytes=vmem_limit,
            ),
            cost_estimate=pl.CostEstimate(
                flops=2 * N * C + 2 * H * C,
                transcendentals=C,
                bytes_accessed=2 * N * C * itemsize + 2 * H * C * itemsize,
            ),
        )(x, w1, w2t)

    tile_a, tile_b = _pick_tiles(N, C, itemsize, vmem_limit)
    if tile_n is not None:
        cap = max(8, (N // 8) * 8)
        tile_a = tile_b = max(8, min(_round8(int(tile_n)), cap))

    # ---- Phase A: per-tile partial column sums (f32), parallel over tiles. --
    nt_a = int(pl.cdiv(N, tile_a))
    partials = pl.pallas_call(
        functools.partial(_se_partial_sum_kernel, tile_n=tile_a, n_rows=N),
        out_shape=jax.ShapeDtypeStruct((nt_a * 8, C), jnp.float32),
        grid_spec=pltpu.PrefetchScalarGridSpec(
            num_scalar_prefetch=0,
            grid=(nt_a,),
            in_specs=[pl.BlockSpec((tile_a, C), lambda i: (i, 0))],
            out_specs=pl.BlockSpec((8, C), lambda i: (i, 0)),
        ),
        compiler_params=pltpu.CompilerParams(
            dimension_semantics=("parallel",),   # v7x: both TensorCores reduce
            vmem_limit_bytes=vmem_limit,
        ),
        cost_estimate=pl.CostEstimate(
            flops=N * C,
            transcendentals=0,
            bytes_accessed=N * C * itemsize + nt_a * 8 * C * 4,
        ),
    )(x)

    # ---- Tiny excitation in plain f32 jnp (negligible vs the HBM passes). ---
    y = _excitation(jnp.sum(partials, axis=0, keepdims=True), w1, w2, N, dtype)

    # ---- Phase B: stream out = x * y. ----------------------------------------
    nt_b = int(pl.cdiv(N, tile_b))
    scale_cost = pl.CostEstimate(
        flops=N * C,
        transcendentals=0,
        bytes_accessed=2 * N * C * itemsize + C * itemsize,
    )

    def scale_call(deep_buffering):
        if deep_buffering:
            x_spec = pl.BlockSpec((tile_b, C), lambda i: (i, 0),
                                  pipeline_mode=pl.Buffered(3))
            o_spec = pl.BlockSpec((tile_b, C), lambda i: (i, 0),
                                  pipeline_mode=pl.Buffered(3))
        else:
            x_spec = pl.BlockSpec((tile_b, C), lambda i: (i, 0))
            o_spec = pl.BlockSpec((tile_b, C), lambda i: (i, 0))
        return pl.pallas_call(
            _se_scale_kernel,
            out_shape=jax.ShapeDtypeStruct((N, C), dtype),
            grid_spec=pltpu.PrefetchScalarGridSpec(
                num_scalar_prefetch=0,
                grid=(nt_b,),
                in_specs=[x_spec, pl.BlockSpec((1, C), lambda i: (0, 0))],
                out_specs=o_spec,
            ),
            compiler_params=pltpu.CompilerParams(
                dimension_semantics=("parallel",),
                vmem_limit_bytes=vmem_limit,
            ),
            cost_estimate=scale_cost,
            # TODO(synk): add input_output_aliases={0: 0} when the caller
            # donates x (saves an N x C HBM allocation; DMA traffic unchanged).
        )(x, y)

    try:
        # 3-deep buffering hides DMA issue latency between tiles.
        return scale_call(True)
    except Exception:
        # Fallback for JAX versions where pipeline_mode=pl.Buffered is not
        # accepted on top-level pallas_call BlockSpecs.
        return scale_call(False)


# ---------------------------------------------------------------------------
# Reference + self-test
# ---------------------------------------------------------------------------

def se_reference(x, w1, w2):
    # float64 NumPy reference (avoids TPU matmul-precision ambiguity).
    x = np.asarray(x, np.float64)
    w1 = np.asarray(w1, np.float64)
    w2 = np.asarray(w2, np.float64)
    m = x.mean(axis=0, keepdims=True)
    h = np.maximum(m @ w1.T, 0.0)
    y = 1.0 / (1.0 + np.exp(-(h @ w2.T)))
    return x * y


if __name__ == "__main__":
    # Lane-dense C (multiple of 128); N chosen so the forced streaming path
    # exercises a ragged last tile (1000 % 256 != 0); reduction=16.
    N, C, reduction = 1000, 256, 16
    H = C // reduction

    key = jax.random.PRNGKey(0)
    kx, k1, k2 = jax.random.split(key, 3)

    x = jax.random.normal(kx, (N, C), dtype=jnp.float32)
    # Bias-free Linear weights (PyTorch shape convention: (out, in)).
    bound1 = float(1.0 / np.sqrt(C))
    bound2 = float(1.0 / np.sqrt(H))
    w1 = jax.random.uniform(k1, (H, C), jnp.float32, -bound1, bound1)
    w2 = jax.random.uniform(k2, (C, H), jnp.float32, -bound2, bound2)

    ref = se_reference(x, w1, w2)

    # Fused (whole-problem-in-VMEM) fast path.
    out_fused = jax.block_until_ready(se_module(x, w1, w2))
    assert out_fused.shape == (N, C)
    assert np.allclose(np.asarray(out_fused), ref, rtol=1e-5, atol=1e-5)

    # Streaming two-phase path with a ragged last tile (no padding, masked reads).
    out_stream = jax.block_until_ready(se_module(x, w1, w2, fused=False, tile_n=256))
    assert out_stream.shape == (N, C)
    assert np.allclose(np.asarray(out_stream), ref, rtol=1e-5, atol=1e-5)

    print("KERNEL_OK")
</pallas_src>

<mosaic_0001>
module attributes {stable_mosaic.version = 11 : i64} {
  func.func @_se_fused_kernel(%arg0: i32, %arg1: memref<1000x256xf32, #tpu.memory_space<vmem>>, %arg2: memref<16x256xf32, #tpu.memory_space<vmem>>, %arg3: memref<16x256xf32, #tpu.memory_space<vmem>>, %arg4: memref<1000x256xf32, #tpu.memory_space<vmem>>) attributes {dimension_semantics = [#tpu.dimension_semantics<arbitrary>], iteration_bounds = array<i64: 1>, scalar_prefetch = 0 : i64, scratch_operands = 0 : i64, tpu.core_type = #tpu.core_type<tc>, window_params = [{pipeline_mode = #tpu.pipeline_mode<synchronous>, transform_indices = @transform_0, window_bounds = array<i64: 1000, 256>}, {pipeline_mode = #tpu.pipeline_mode<synchronous>, transform_indices = @transform_1, window_bounds = array<i64: 16, 256>}, {pipeline_mode = #tpu.pipeline_mode<synchronous>, transform_indices = @transform_2, window_bounds = array<i64: 16, 256>}, {pipeline_mode = #tpu.pipeline_mode<synchronous>, transform_indices = @transform_3, window_bounds = array<i64: 1000, 256>}]} {
    %c0 = arith.constant 0 : index
    %c0_0 = arith.constant 0 : index
    %0 = vector.load %arg1[%c0, %c0_0] : memref<1000x256xf32, #tpu.memory_space<vmem>>, vector<1000x256xf32>
    %cst = arith.constant dense<0.000000e+00> : vector<256xf32>
    %1 = vector.multi_reduction <add>, %0, %cst [0] : vector<1000x256xf32> to vector<256xf32>
    %2 = vector.shape_cast %1 : vector<256xf32> to vector<1x256xf32>
    %cst_1 = arith.constant 1.000000e-03 : f32
    %3 = vector.broadcast %cst_1 : f32 to vector<1x256xf32>
    %4 = arith.mulf %2, %3 : vector<1x256xf32>
    %c0_2 = arith.constant 0 : index
    %c0_3 = arith.constant 0 : index
    %5 = vector.load %arg2[%c0_2, %c0_3] : memref<16x256xf32, #tpu.memory_space<vmem>>, vector<16x256xf32>
    %6 = vector.broadcast %4 : vector<1x256xf32> to vector<16x256xf32>
    %7 = arith.mulf %5, %6 : vector<16x256xf32>
    %cst_4 = arith.constant dense<0.000000e+00> : vector<16xf32>
    %8 = vector.multi_reduction <add>, %7, %cst_4 [1] : vector<16x256xf32> to vector<16xf32>
    %9 = vector.shape_cast %8 : vector<16xf32> to vector<16x1xf32>
    %cst_5 = arith.constant 0.000000e+00 : f32
    %10 = vector.broadcast %cst_5 : f32 to vector<16x1xf32>
    %11 = arith.maximumf %9, %10 : vector<16x1xf32>
    %c0_6 = arith.constant 0 : index
    %c0_7 = arith.constant 0 : index
    %12 = vector.load %arg3[%c0_6, %c0_7] : memref<16x256xf32, #tpu.memory_space<vmem>>, vector<16x256xf32>
    %13 = vector.broadcast %11 : vector<16x1xf32> to vector<16x256xf32>
    %14 = arith.mulf %12, %13 : vector<16x256xf32>
    %cst_8 = arith.constant dense<0.000000e+00> : vector<256xf32>
    %15 = vector.multi_reduction <add>, %14, %cst_8 [0] : vector<16x256xf32> to vector<256xf32>
    %16 = vector.shape_cast %15 : vector<256xf32> to vector<1x256xf32>
    %17 = arith.negf %16 : vector<1x256xf32>
    %18 = math.exp %17 : vector<1x256xf32>
    %cst_9 = arith.constant 1.000000e+00 : f32
    %19 = vector.broadcast %cst_9 : f32 to vector<1x256xf32>
    %20 = arith.addf %19, %18 : vector<1x256xf32>
    %21 = arith.divf %19, %20 : vector<1x256xf32>
    %22 = vector.broadcast %21 : vector<1x256xf32> to vector<1000x256xf32>
    %23 = arith.mulf %0, %22 : vector<1000x256xf32>
    %c0_10 = arith.constant 0 : index
    %c0_11 = arith.constant 0 : index
    %24 = vector.load %arg4[%c0_10, %c0_11] : memref<1000x256xf32, #tpu.memory_space<vmem>>, vector<1000x256xf32>
    tpu.vector_store %arg4[%c0_10, %c0_11], %23 {strides = array<i32>} : memref<1000x256xf32, #tpu.memory_space<vmem>>, vector<1000x256xf32>,
    return
  }
  func.func @transform_0(%arg0: i32) -> (i32, i32) {
    %c0_i32 = arith.constant 0 : i32
    %c0_i32_0 = arith.constant 0 : i32
    %c0_i32_1 = arith.constant 0 : i32
    return %c0_i32, %c0_i32_0 : i32, i32
  }
  func.func @transform_1(%arg0: i32) -> (i32, i32) {
    %c0_i32 = arith.constant 0 : i32
    %c0_i32_0 = arith.constant 0 : i32
    %c0_i32_1 = arith.constant 0 : i32
    return %c0_i32, %c0_i32_0 : i32, i32
  }
  func.func @transform_2(%arg0: i32) -> (i32, i32) {
    %c0_i32 = arith.constant 0 : i32
    %c0_i32_0 = arith.constant 0 : i32
    %c0_i32_1 = arith.constant 0 : i32
    return %c0_i32, %c0_i32_0 : i32, i32
  }
  func.func @transform_3(%arg0: i32) -> (i32, i32) {
    %c0_i32 = arith.constant 0 : i32
    %c0_i32_0 = arith.constant 0 : i32
    %c0_i32_1 = arith.constant 0 : i32
    return %c0_i32, %c0_i32_0 : i32, i32
  }
}

</mosaic_0001>

<llo_original>
// kernel: tpu_custom_call.1
$region0: #{tpu_custom_call.1}
  #allocation0 [shape = 'u32[]', space=smem, size = 0x4, offset = 0x4, fixed_abs, tag = 'smem constant byte address 0x4 - core index']
  #allocation1 [shape = 'u32[144,128]{1,0:T(1,128)}', space=vmem, size = 0x12000, scoped, tag = 'internal scratch']
  %s0 = inlined_call_operand.hbm [shape: f32[1000,256], index: 0, kind: input, shape index: {}]
  %s1 = inlined_call_operand.hbm [shape: f32[16,256], index: 1, kind: input, shape index: {}]
  %s2 = inlined_call_operand.hbm [shape: f32[16,256], index: 2, kind: input, shape index: {}]
  %s3 = inlined_call_operand.hbm [shape: f32[1000,256], index: 3, kind: output, shape index: {}]
  %s4 = sld [smem:[#allocation0]]
  $region34: #{tpu_custom_call.1} parent=0
    _
  %s6 = ssub.s32 1, %s4
  %s7 = scalar_select 0, %s6, %s4
  $region1: #{tpu_custom_call.1} parent=0
    #allocation2 [shape = 'u8[1024000]{0}', space=vmem, size = 0xfa000, scoped, tag = 'input window, operand 0, single buffered']
    #allocation3 [shape = 's32[1]{0}', space=sflag, size = 0x4, scoped, tag = 'scoped memory for tpu_custom_call.1']
    #allocation4 [shape = 's32[1]{0}', space=sflag, size = 0x4, scoped, tag = 'scoped memory for tpu_custom_call.1']
    #allocation5 [shape = 'u8[16384]{0}', space=vmem, size = 0x4000, scoped, tag = 'input window, operand 1, single buffered']
    #allocation6 [shape = 's32[1]{0}', space=sflag, size = 0x4, scoped, tag = 'scoped memory for tpu_custom_call.1']
    #allocation7 [shape = 'u8[16384]{0}', space=vmem, size = 0x4000, scoped, tag = 'input window, operand 2, single buffered']
    #allocation8 [shape = 'u8[1024000]{0}', space=vmem, size = 0xfa000, scoped, tag = 'output window, operand 0, single buffered']
    %8 = vsyncpa [#allocation3], 0
    %9 = vsyncpa [#allocation6], 0
    %10 = vsyncpa [#allocation4], 0
    // Predicated region
    $region2: #{tpu_custom_call.1} parent=1 // pred_check
      _
    $region3: #{tpu_custom_call.1} parent=1 // pred_check_branch
      %12 = sbr.rel (0) target = $region5
    $region4: #{tpu_custom_call.1} parent=1 // pred_region
      %s14 = ssub.s32 32000, 32000
      %15 = vsyncadd [#allocation3], %s14
      %s16 = sshll.u32 [#allocation2], 4
      %s17 = int_to_ptr.vmem [resolvable:$true] %s16
      %22 = dma.hbm_to_vmem [thread:$0]  %s0, 32000, %s17, [#allocation3], 256, 256, 16
    $region5: #{tpu_custom_call.1} parent=1 // pred_fallthru
      _
    // Predicated region
    $region6: #{tpu_custom_call.1} parent=1 // pred_check
      _
    $region7: #{tpu_custom_call.1} parent=1 // pred_check_branch
      %24 = sbr.rel (0) target = $region9
    $region8: #{tpu_custom_call.1} parent=1 // pred_region
      %s26 = ssub.s32 512, 512
      %27 = vsyncadd [#allocation6], %s26
      %s28 = sshll.u32 [#allocation5], 4
      %s29 = int_to_ptr.vmem [resolvable:$true] %s28
      %34 = dma.hbm_to_vmem [thread:$0]  %s1, 512, %s29, [#allocation6], 256, 256, 16
    $region9: #{tpu_custom_call.1} parent=1 // pred_fallthru
      _
    // Predicated region
    $region10: #{tpu_custom_call.1} parent=1 // pred_check
      _
    $region11: #{tpu_custom_call.1} parent=1 // pred_check_branch
      %36 = sbr.rel (0) target = $region13
    $region12: #{tpu_custom_call.1} parent=1 // pred_region
      %s38 = ssub.s32 512, 512
      %39 = vsyncadd [#allocation6], %s38
      %s40 = sshll.u32 [#allocation7], 4
      %s41 = int_to_ptr.vmem [resolvable:$true] %s40
      %46 = dma.hbm_to_vmem [thread:$0]  %s2, 512, %s41, [#allocation6], 256, 256, 16
    $region13: #{tpu_custom_call.1} parent=1 // pred_fallthru
      _
    // Predicated region
    $region14: #{tpu_custom_call.1} parent=1 // pred_check
      _
    $region15: #{tpu_custom_call.1} parent=1 // pred_check_branch
      %48 = sbr.rel (0) target = $region17
    $region16: #{tpu_custom_call.1} parent=1 // pred_region
      %49 = dma.done [#allocation3], 32000
    $region17: #{tpu_custom_call.1} parent=1 // pred_fallthru
      _
    // Predicated region
    $region18: #{tpu_custom_call.1} parent=1 // pred_check
      _
    $region19: #{tpu_custom_call.1} parent=1 // pred_check_branch
      %51 = sbr.rel (0) target = $region21
    $region20: #{tpu_custom_call.1} parent=1 // pred_region
      %52 = dma.done [#allocation6], 512
    $region21: #{tpu_custom_call.1} parent=1 // pred_fallthru
      _
    // Predicated region
    $region22: #{tpu_custom_call.1} parent=1 // pred_check
      _
    $region23: #{tpu_custom_call.1} parent=1 // pred_check_branch
      %54 = sbr.rel (0) target = $region25
    $region24: #{tpu_custom_call.1} parent=1 // pred_region
      %55 = dma.done [#allocation6], 512
    $region25: #{tpu_custom_call.1} parent=1 // pred_fallthru
      _
    %v56 = vld [vmem:[#allocation2] sm:$0xff]
    %v57 = vld [vmem:[#allocation2 + $0x8] sm:$0xff]
    %v58 = vld [vmem:[#allocation2 + $0x10] sm:$0xff]
    %v59 = vld [vmem:[#allocation2 + $0x18] sm:$0xff]
    %v60 = vld [vmem:[#allocation2 + $0x20] sm:$0xff]
    %v61 = vld [vmem:[#allocation2 + $0x28] sm:$0xff]
    %v62 = vld [vmem:[#allocation2 + $0x30] sm:$0xff]
    %v63 = vld [vmem:[#allocation2 + $0x38] sm:$0xff]
    %v64 = vld [vmem:[#allocation2 + $0x40] sm:$0xff]
    %v65 = vld [vmem:[#allocation2 + $0x48] sm:$0xff]
    %v66 = vld [vmem:[#allocation2 + $0x50] sm:$0xff]
    %v67 = vld [vmem:[#allocation2 + $0x58] sm:$0xff]
    %v68 = vld [vmem:[#allocation2 + $0x60] sm:$0xff]
    %v69 = vld [vmem:[#allocation2 + $0x68] sm:$0xff]
    %v70 = vld [vmem:[#allocation2 + $0x70] sm:$0xff]
    %v71 = vld [vmem:[#allocation2 + $0x78] sm:$0xff]
    %v72 = vld [vmem:[#allocation2 + $0x80] sm:$0xff]
    %v73 = vld [vmem:[#allocation2 + $0x88] sm:$0xff]
    %v74 = vld [vmem:[#allocation2 + $0x90] sm:$0xff]
    %v75 = vld [vmem:[#allocation2 + $0x98] sm:$0xff]
    %v76 = vld [vmem:[#allocation2 + $0xa0] sm:$0xff]
    %v77 = vld [vmem:[#allocation2 + $0xa8] sm:$0xff]
    %v78 = vld [vmem:[#allocation2 + $0xb0] sm:$0xff]
    %v79 = vld [vmem:[#allocation2 + $0xb8] sm:$0xff]
    %v80 = vld [vmem:[#allocation2 + $0xc0] sm:$0xff]
    %v81 = vld [vmem:[#allocation2 + $0xc8] sm:$0xff]
    %v82 = vld [vmem:[#allocation2 + $0xd0] sm:$0xff]
    %v83 = vld [vmem:[#allocation2 + $0xd8] sm:$0xff]
    %v84 = vld [vmem:[#allocation2 + $0xe0] sm:$0xff]
    %v85 = vld [vmem:[#allocation2 + $0xe8] sm:$0xff]
    %v86 = vld [vmem:[#allocation2 + $0xf0] sm:$0xff]
    %v87 = vld [vmem:[#allocation2 + $0xf8] sm:$0xff]
    %v88 = vld [vmem:[#allocation2 + $0x100] sm:$0xff]
    %v89 = vld [vmem:[#allocation2 + $0x108] sm:$0xff]
    %v90 = vld [vmem:[#allocation2 + $0x110] sm:$0xff]
    %v91 = vld [vmem:[#allocation2 + $0x118] sm:$0xff]
    %v92 = vld [vmem:[#allocation2 + $0x120] sm:$0xff]
    %v93 = vld [vmem:[#allocation2 + $0x128] sm:$0xff]
    %v94 = vld [vmem:[#allocation2 + $0x130] sm:$0xff]
    %v95 = vld [vmem:[#allocation2 + $0x138] sm:$0xff]
    %v96 = vld [vmem:[#allocation2 + $0x140] sm:$0xff]
    %v97 = vld [vmem:[#allocation2 + $0x148] sm:$0xff]
    %v98 = vld [vmem:[#allocation2 + $0x150] sm:$0xff]
    %v99 = vld [vmem:[#allocation2 + $0x158] sm:$0xff]
    %v100 = vld [vmem:[#allocation2 + $0x160] sm:$0xff]
    %v101 = vld [vmem:[#allocation2 + $0x168] sm:$0xff]
    %v102 = vld [vmem:[#allocation2 + $0x170] sm:$0xff]
    %v103 = vld [vmem:[#allocation2 + $0x178] sm:$0xff]
    %v104 = vld [vmem:[#allocation2 + $0x180] sm:$0xff]
    %v105 = vld [vmem:[#allocation2 + $0x188] sm:$0xff]
    %v106 = vld [vmem:[#allocation2 + $0x190] sm:$0xff]
    %v107 = vld [vmem:[#allocation2 + $0x198] sm:$0xff]
    %v108 = vld [vmem:[#allocation2 + $0x1a0] sm:$0xff]
    %v109 = vld [vmem:[#allocation2 + $0x1a8] sm:$0xff]
    %v110 = vld [vmem:[#allocation2 + $0x1b0] sm:$0xff]
    %v111 = vld [vmem:[#allocation2 + $0x1b8] sm:$0xff]
    %v112 = vld [vmem:[#allocation2 + $0x1c0] sm:$0xff]
    %v113 = vld [vmem:[#allocation2 + $0x1c8] sm:$0xff]
    %v114 = vld [vmem:[#allocation2 + $0x1d0] sm:$0xff]
    %v115 = vld [vmem:[#allocation2 + $0x1d8] sm:$0xff]
    %v116 = vld [vmem:[#allocation2 + $0x1e0] sm:$0xff]
    %v117 = vld [vmem:[#allocation2 + $0x1e8] sm:$0xff]
    %v118 = vld [vmem:[#allocation2 + $0x1f0] sm:$0xff]
    %v119 = vld [vmem:[#allocation2 + $0x1f8] sm:$0xff]
    %v120 = vld [vmem:[#allocation2 + $0x200] sm:$0xff]
    %v121 = vld [vmem:[#allocation2 + $0x208] sm:$0xff]
    %v122 = vld [vmem:[#allocation2 + $0x210] sm:$0xff]
    %v123 = vld [vmem:[#allocation2 + $0x218] sm:$0xff]
    %v124 = vld [vmem:[#allocation2 + $0x220] sm:$0xff]
    %v125 = vld [vmem:[#allocation2 + $0x228] sm:$0xff]
    %v126 = vld [vmem:[#allocation2 + $0x230] sm:$0xff]
    %v127 = vld [vmem:[#allocation2 + $0x238] sm:$0xff]
    %v128 = vld [vmem:[#allocation2 + $0x240] sm:$0xff]
    %v129 = vld [vmem:[#allocation2 + $0x248] sm:$0xff]
    %v130 = vld [vmem:[#allocation2 + $0x250] sm:$0xff]
    %v131 = vld [vmem:[#allocation2 + $0x258] sm:$0xff]
    %v132 = vld [vmem:[#allocation2 + $0x260] sm:$0xff]
    %v133 = vld [vmem:[#allocation2 + $0x268] sm:$0xff]
    %v134 = vld [vmem:[#allocation2 + $0x270] sm:$0xff]
    %v135 = vld [vmem:[#allocation2 + $0x278] sm:$0xff]
    %v136 = vld [vmem:[#allocation2 + $0x280] sm:$0xff]
    %v137 = vld [vmem:[#allocation2 + $0x288] sm:$0xff]
    %v138 = vld [vmem:[#allocation2 + $0x290] sm:$0xff]
    %v139 = vld [vmem:[#allocation2 + $0x298] sm:$0xff]
    %v140 = vld [vmem:[#allocation2 + $0x2a0] sm:$0xff]
    %v141 = vld [vmem:[#allocation2 + $0x2a8] sm:$0xff]
    %v142 = vld [vmem:[#allocation2 + $0x2b0] sm:$0xff]
    %v143 = vld [vmem:[#allocation2 + $0x2b8] sm:$0xff]
    %v144 = vld [vmem:[#allocation2 + $0x2c0] sm:$0xff]
    %v145 = vld [vmem:[#allocation2 + $0x2c8] sm:$0xff]
    %v146 = vld [vmem:[#allocation2 + $0x2d0] sm:$0xff]
    %v147 = vld [vmem:[#allocation2 + $0x2d8] sm:$0xff]
    %v148 = vld [vmem:[#allocation2 + $0x2e0] sm:$0xff]
    %v149 = vld [vmem:[#allocation2 + $0x2e8] sm:$0xff]
    %v150 = vld [vmem:[#allocation2 + $0x2f0] sm:$0xff]
    %v151 = vld [vmem:[#allocation2 + $0x2f8] sm:$0xff]
    %v152 = vld [vmem:[#allocation2 + $0x300] sm:$0xff]
    %v153 = vld [vmem:[#allocation2 + $0x308] sm:$0xff]
    %v154 = vld [vmem:[#allocation2 + $0x310] sm:$0xff]
    %v155 = vld [vmem:[#allocation2 + $0x318] sm:$0xff]
    %v156 = vld [vmem:[#allocation2 + $0x320] sm:$0xff]
    %v157 = vld [vmem:[#allocation2 + $0x328] sm:$0xff]
    %v158 = vld [vmem:[#allocation2 + $0x330] sm:$0xff]
    %v159 = vld [vmem:[#allocation2 + $0x338] sm:$0xff]
    %v160 = vld [vmem:[#allocation2 + $0x340] sm:$0xff]
    %v161 = vld [vmem:[#allocation2 + $0x348] sm:$0xff]
    %v162 = vld [vmem:[#allocation2 + $0x350] sm:$0xff]
    %v163 = vld [vmem:[#allocation2 + $0x358] sm:$0xff]
    %v164 = vld [vmem:[#allocation2 + $0x360] sm:$0xff]
    %v165 = vld [vmem:[#allocation2 + $0x368] sm:$0xff]
    %v166 = vld [vmem:[#allocation2 + $0x370] sm:$0xff]
    %v167 = vld [vmem:[#allocation2 + $0x378] sm:$0xff]
    %v168 = vld [vmem:[#allocation2 + $0x380] sm:$0xff]
    %v169 = vld [vmem:[#allocation2 + $0x388] sm:$0xff]
    %v170 = vld [vmem:[#allocation2 + $0x390] sm:$0xff]
    %v171 = vld [vmem:[#allocation2 + $0x398] sm:$0xff]
    %v172 = vld [vmem:[#allocation2 + $0x3a0] sm:$0xff]
    %v173 = vld [vmem:[#allocation2 + $0x3a8] sm:$0xff]
    %v174 = vld [vmem:[#allocation2 + $0x3b0] sm:$0xff]
    %v175 = vld [vmem:[#allocation2 + $0x3b8] sm:$0xff]
    %v176 = vld [vmem:[#allocation2 + $0x3c0] sm:$0xff]
    %v177 = vld [vmem:[#allocation2 + $0x3c8] sm:$0xff]
    %v178 = vld [vmem:[#allocation2 + $0x3d0] sm:$0xff]
    %v179 = vld [vmem:[#allocation2 + $0x3d8] sm:$0xff]
    %v180 = vld [vmem:[#allocation2 + $0x3e0] sm:$0xff]
    %v181 = vld [vmem:[#allocation2 + $0x3e8] sm:$0xff]
    %v182 = vld [vmem:[#allocation2 + $0x3f0] sm:$0xff]
    %v183 = vld [vmem:[#allocation2 + $0x3f8] sm:$0xff]
    %v184 = vld [vmem:[#allocation2 + $0x400] sm:$0xff]
    %v185 = vld [vmem:[#allocation2 + $0x408] sm:$0xff]
    %v186 = vld [vmem:[#allocation2 + $0x410] sm:$0xff]
    %v187 = vld [vmem:[#allocation2 + $0x418] sm:$0xff]
    %v188 = vld [vmem:[#allocation2 + $0x420] sm:$0xff]
    %v189 = vld [vmem:[#allocation2 + $0x428] sm:$0xff]
    %v190 = vld [vmem:[#allocation2 + $0x430] sm:$0xff]
    %v191 = vld [vmem:[#allocation2 + $0x438] sm:$0xff]
    %v192 = vld [vmem:[#allocation2 + $0x440] sm:$0xff]
    %v193 = vld [vmem:[#allocation2 + $0x448] sm:$0xff]
    %v194 = vld [vmem:[#allocation2 + $0x450] sm:$0xff]
    %v195 = vld [vmem:[#allocation2 + $0x458] sm:$0xff]
    %v196 = vld [vmem:[#allocation2 + $0x460] sm:$0xff]
    %v197 = vld [vmem:[#allocation2 + $0x468] sm:$0xff]
    %v198 = vld [vmem:[#allocation2 + $0x470] sm:$0xff]
    %v199 = vld [vmem:[#allocation2 + $0x478] sm:$0xff]
    %v200 = vld [vmem:[#allocation2 + $0x480] sm:$0xff]
    %v201 = vld [vmem:[#allocation2 + $0x488] sm:$0xff]
    %v202 = vld [vmem:[#allocation2 + $0x490] sm:$0xff]
    %v203 = vld [vmem:[#allocation2 + $0x498] sm:$0xff]
    %v204 = vld [vmem:[#allocation2 + $0x4a0] sm:$0xff]
    %v205 = vld [vmem:[#allocation2 + $0x4a8] sm:$0xff]
    %v206 = vld [vmem:[#allocation2 + $0x4b0] sm:$0xff]
    %v207 = vld [vmem:[#allocation2 + $0x4b8] sm:$0xff]
    %v208 = vld [vmem:[#allocation2 + $0x4c0] sm:$0xff]
    %v209 = vld [vmem:[#allocation2 + $0x4c8] sm:$0xff]
    %v210 = vld [vmem:[#allocation2 + $0x4d0] sm:$0xff]
    %v211 = vld [vmem:[#allocation2 + $0x4d8] sm:$0xff]
    %v212 = vld [vmem:[#allocation2 + $0x4e0] sm:$0xff]
    %v213 = vld [vmem:[#allocation2 + $0x4e8] sm:$0xff]
    %v214 = vld [vmem:[#allocation2 + $0x4f0] sm:$0xff]
    %v215 = vld [vmem:[#allocation2 + $0x4f8] sm:$0xff]
    %v216 = vld [vmem:[#allocation2 + $0x500] sm:$0xff]
    %v217 = vld [vmem:[#allocation2 + $0x508] sm:$0xff]
    %v218 = vld [vmem:[#allocation2 + $0x510] sm:$0xff]
    %v219 = vld [vmem:[#allocation2 + $0x518] sm:$0xff]
    %v220 = vld [vmem:[#allocation2 + $0x520] sm:$0xff]
    %v221 = vld [vmem:[#allocation2 + $0x528] sm:$0xff]
    %v222 = vld [vmem:[#allocation2 + $0x530] sm:$0xff]
    %v223 = vld [vmem:[#allocation2 + $0x538] sm:$0xff]
    %v224 = vld [vmem:[#allocation2 + $0x540] sm:$0xff]
    %v225 = vld [vmem:[#allocation2 + $0x548] sm:$0xff]
    %v226 = vld [vmem:[#allocation2 + $0x550] sm:$0xff]
    %v227 = vld [vmem:[#allocation2 + $0x558] sm:$0xff]
    %v228 = vld [vmem:[#allocation2 + $0x560] sm:$0xff]
    %v229 = vld [vmem:[#allocation2 + $0x568] sm:$0xff]
    %v230 = vld [vmem:[#allocation2 + $0x570] sm:$0xff]
    %v231 = vld [vmem:[#allocation2 + $0x578] sm:$0xff]
    %v232 = vld [vmem:[#allocation2 + $0x580] sm:$0xff]
    %v233 = vld [vmem:[#allocation2 + $0x588] sm:$0xff]
    %v234 = vld [vmem:[#allocation2 + $0x590] sm:$0xff]
    %v235 = vld [vmem:[#allocation2 + $0x598] sm:$0xff]
    %v236 = vld [vmem:[#allocation2 + $0x5a0] sm:$0xff]
    %v237 = vld [vmem:[#allocation2 + $0x5a8] sm:$0xff]
    %v238 = vld [vmem:[#allocation2 + $0x5b0] sm:$0xff]
    %v239 = vld [vmem:[#allocation2 + $0x5b8] sm:$0xff]
    %v240 = vld [vmem:[#allocation2 + $0x5c0] sm:$0xff]
    %v241 = vld [vmem:[#allocation2 + $0x5c8] sm:$0xff]
    %v242 = vld [vmem:[#allocation2 + $0x5d0] sm:$0xff]
    %v243 = vld [vmem:[#allocation2 + $0x5d8] sm:$0xff]
    %v244 = vld [vmem:[#allocation2 + $0x5e0] sm:$0xff]
    %v245 = vld [vmem:[#allocation2 + $0x5e8] sm:$0xff]
    %v246 = vld [vmem:[#allocation2 + $0x5f0] sm:$0xff]
    %v247 = vld [vmem:[#allocation2 + $0x5f8] sm:$0xff]
    %v248 = vld [vmem:[#allocation2 + $0x600] sm:$0xff]
    %v249 = vld [vmem:[#allocation2 + $0x608] sm:$0xff]
    %v250 = vld [vmem:[#allocation2 + $0x610] sm:$0xff]
    %v251 = vld [vmem:[#allocation2 + $0x618] sm:$0xff]
    %v252 = vld [vmem:[#allocation2 + $0x620] sm:$0xff]
    %v253 = vld [vmem:[#allocation2 + $0x628] sm:$0xff]
    %v254 = vld [vmem:[#allocation2 + $0x630] sm:$0xff]
    %v255 = vld [vmem:[#allocation2 + $0x638] sm:$0xff]
    %v256 = vld [vmem:[#allocation2 + $0x640] sm:$0xff]
    %v257 = vld [vmem:[#allocation2 + $0x648] sm:$0xff]
    %v258 = vld [vmem:[#allocation2 + $0x650] sm:$0xff]
    %v259 = vld [vmem:[#allocation2 + $0x658] sm:$0xff]
    %v260 = vld [vmem:[#allocation2 + $0x660] sm:$0xff]
    %v261 = vld [vmem:[#allocation2 + $0x668] sm:$0xff]
    %v262 = vld [vmem:[#allocation2 + $0x670] sm:$0xff]
    %v263 = vld [vmem:[#allocation2 + $0x678] sm:$0xff]
    %v264 = vld [vmem:[#allocation2 + $0x680] sm:$0xff]
    %v265 = vld [vmem:[#allocation2 + $0x688] sm:$0xff]
    %v266 = vld [vmem:[#allocation2 + $0x690] sm:$0xff]
    %v267 = vld [vmem:[#allocation2 + $0x698] sm:$0xff]
    %v268 = vld [vmem:[#allocation2 + $0x6a0] sm:$0xff]
    %v269 = vld [vmem:[#allocation2 + $0x6a8] sm:$0xff]
    %v270 = vld [vmem:[#allocation2 + $0x6b0] sm:$0xff]
    %v271 = vld [vmem:[#allocation2 + $0x6b8] sm:$0xff]
    %v272 = vld [vmem:[#allocation2 + $0x6c0] sm:$0xff]
    %v273 = vld [vmem:[#allocation2 + $0x6c8] sm:$0xff]
    %v274 = vld [vmem:[#allocation2 + $0x6d0] sm:$0xff]
    %v275 = vld [vmem:[#allocation2 + $0x6d8] sm:$0xff]
    %v276 = vld [vmem:[#allocation2 + $0x6e0] sm:$0xff]
    %v277 = vld [vmem:[#allocation2 + $0x6e8] sm:$0xff]
    %v278 = vld [vmem:[#allocation2 + $0x6f0] sm:$0xff]
    %v279 = vld [vmem:[#allocation2 + $0x6f8] sm:$0xff]
    %v280 = vld [vmem:[#allocation2 + $0x700] sm:$0xff]
    %v281 = vld [vmem:[#allocation2 + $0x708] sm:$0xff]
    %v282 = vld [vmem:[#allocation2 + $0x710] sm:$0xff]
    %v283 = vld [vmem:[#allocation2 + $0x718] sm:$0xff]
    %v284 = vld [vmem:[#allocation2 + $0x720] sm:$0xff]
    %v285 = vld [vmem:[#allocation2 + $0x728] sm:$0xff]
    %v286 = vld [vmem:[#allocation2 + $0x730] sm:$0xff]
    %v287 = vld [vmem:[#allocation2 + $0x738] sm:$0xff]
    %v288 = vld [vmem:[#allocation2 + $0x740] sm:$0xff]
    %v289 = vld [vmem:[#allocation2 + $0x748] sm:$0xff]
    %v290 = vld [vmem:[#allocation2 + $0x750] sm:$0xff]
    %v291 = vld [vmem:[#allocation2 + $0x758] sm:$0xff]
    %v292 = vld [vmem:[#allocation2 + $0x760] sm:$0xff]
    %v293 = vld [vmem:[#allocation2 + $0x768] sm:$0xff]
    %v294 = vld [vmem:[#allocation2 + $0x770] sm:$0xff]
    %v295 = vld [vmem:[#allocation2 + $0x778] sm:$0xff]
    %v296 = vld [vmem:[#allocation2 + $0x780] sm:$0xff]
    %v297 = vld [vmem:[#allocation2 + $0x788] sm:$0xff]
    %v298 = vld [vmem:[#allocation2 + $0x790] sm:$0xff]
    %v299 = vld [vmem:[#allocation2 + $0x798] sm:$0xff]
    %v300 = vld [vmem:[#allocation2 + $0x7a0] sm:$0xff]
    %v301 = vld [vmem:[#allocation2 + $0x7a8] sm:$0xff]
    %v302 = vld [vmem:[#allocation2 + $0x7b0] sm:$0xff]
    %v303 = vld [vmem:[#allocation2 + $0x7b8] sm:$0xff]
    %v304 = vld [vmem:[#allocation2 + $0x7c0] sm:$0xff]
    %v305 = vld [vmem:[#allocation2 + $0x7c8] sm:$0xff]
    %v306 = vadd.f32 %v56, %v58
    %v307 = vadd.f32 %v306, %v60
    %v308 = vadd.f32 %v307, %v62
    %v309 = vadd.f32 %v308, %v64
    %v310 = vadd.f32 %v309, %v66
    %v311 = vadd.f32 %v310, %v68
    %v312 = vadd.f32 %v311, %v70
    %v313 = vadd.f32 %v312, %v72
    %v314 = vadd.f32 %v313, %v74
    %v315 = vadd.f32 %v314, %v76
    %v316 = vadd.f32 %v315, %v78
    %v317 = vadd.f32 %v316, %v80
    %v318 = vadd.f32 %v317, %v82
    %v319 = vadd.f32 %v318, %v84
    %v320 = vadd.f32 %v319, %v86
    %v321 = vadd.f32 %v320, %v88
    %v322 = vadd.f32 %v321, %v90
    %v323 = vadd.f32 %v322, %v92
    %v324 = vadd.f32 %v323, %v94
    %v325 = vadd.f32 %v324, %v96
    %v326 = vadd.f32 %v325, %v98
    %v327 = vadd.f32 %v326, %v100
    %v328 = vadd.f32 %v327, %v102
    %v329 = vadd.f32 %v328, %v104
    %v330 = vadd.f32 %v329, %v106
    %v331 = vadd.f32 %v330, %v108
    %v332 = vadd.f32 %v331, %v110
    %v333 = vadd.f32 %v332, %v112
    %v334 = vadd.f32 %v333, %v114
    %v335 = vadd.f32 %v334, %v116
    %v336 = vadd.f32 %v335, %v118
    %v337 = vadd.f32 %v336, %v120
    %v338 = vadd.f32 %v337, %v122
    %v339 = vadd.f32 %v338, %v124
    %v340 = vadd.f32 %v339, %v126
    %v341 = vadd.f32 %v340, %v128
    %v342 = vadd.f32 %v341, %v130
    %v343 = vadd.f32 %v342, %v132
    %v344 = vadd.f32 %v343, %v134
    %v345 = vadd.f32 %v344, %v136
    %v346 = vadd.f32 %v345, %v138
    %v347 = vadd.f32 %v346, %v140
    %v348 = vadd.f32 %v347, %v142
    %v349 = vadd.f32 %v348, %v144
    %v350 = vadd.f32 %v349, %v146
    %v351 = vadd.f32 %v350, %v148
    %v352 = vadd.f32 %v351, %v150
    %v353 = vadd.f32 %v352, %v152
    %v354 = vadd.f32 %v353, %v154
    %v355 = vadd.f32 %v354, %v156
    %v356 = vadd.f32 %v355, %v158
    %v357 = vadd.f32 %v356, %v160
    %v358 = vadd.f32 %v357, %v162
    %v359 = vadd.f32 %v358, %v164
    %v360 = vadd.f32 %v359, %v166
    %v361 = vadd.f32 %v360, %v168
    %v362 = vadd.f32 %v361, %v170
    %v363 = vadd.f32 %v362, %v172
    %v364 = vadd.f32 %v363, %v174
    %v365 = vadd.f32 %v364, %v176
    %v366 = vadd.f32 %v365, %v178
    %v367 = vadd.f32 %v366, %v180
    %v368 = vadd.f32 %v367, %v182
    %v369 = vadd.f32 %v368, %v184
    %v370 = vadd.f32 %v369, %v186
    %v371 = vadd.f32 %v370, %v188
    %v372 = vadd.f32 %v371, %v190
    %v373 = vadd.f32 %v372, %v192
    %v374 = vadd.f32 %v373, %v194
    %v375 = vadd.f32 %v374, %v196
    %v376 = vadd.f32 %v375, %v198
    %v377 = vadd.f32 %v376, %v200
    %v378 = vadd.f32 %v377, %v202
    %v379 = vadd.f32 %v378, %v204
    %v380 = vadd.f32 %v379, %v206
    %v381 = vadd.f32 %v380, %v208
    %v382 = vadd.f32 %v381, %v210
    %v383 = vadd.f32 %v382, %v212
    %v384 = vadd.f32 %v383, %v214
    %v385 = vadd.f32 %v384, %v216
    %v386 = vadd.f32 %v385, %v218
    %v387 = vadd.f32 %v386, %v220
    %v388 = vadd.f32 %v387, %v222
    %v389 = vadd.f32 %v388, %v224
    %v390 = vadd.f32 %v389, %v226
    %v391 = vadd.f32 %v390, %v228
    %v392 = vadd.f32 %v391, %v230
    %v393 = vadd.f32 %v392, %v232
    %v394 = vadd.f32 %v393, %v234
    %v395 = vadd.f32 %v394, %v236
    %v396 = vadd.f32 %v395, %v238
    %v397 = vadd.f32 %v396, %v240
    %v398 = vadd.f32 %v397, %v242
    %v399 = vadd.f32 %v398, %v244
    %v400 = vadd.f32 %v399, %v246
    %v401 = vadd.f32 %v400, %v248
    %v402 = vadd.f32 %v401, %v250
    %v403 = vadd.f32 %v402, %v252
    %v404 = vadd.f32 %v403, %v254
    %v405 = vadd.f32 %v404, %v256
    %v406 = vadd.f32 %v405, %v258
    %v407 = vadd.f32 %v406, %v260
    %v408 = vadd.f32 %v407, %v262
    %v409 = vadd.f32 %v408, %v264
    %v410 = vadd.f32 %v409, %v266
    %v411 = vadd.f32 %v410, %v268
    %v412 = vadd.f32 %v411, %v270
    %v413 = vadd.f32 %v412, %v272
    %v414 = vadd.f32 %v413, %v274
    %v415 = vadd.f32 %v414, %v276
    %v416 = vadd.f32 %v415, %v278
    %v417 = vadd.f32 %v416, %v280
    %v418 = vadd.f32 %v417, %v282
    %v419 = vadd.f32 %v418, %v284
    %v420 = vadd.f32 %v419, %v286
    %v421 = vadd.f32 %v420, %v288
    %v422 = vadd.f32 %v421, %v290
    %v423 = vadd.f32 %v422, %v292
    %v424 = vadd.f32 %v423, %v294
    %v425 = vadd.f32 %v424, %v296
    %v426 = vadd.f32 %v425, %v298
    %v427 = vadd.f32 %v426, %v300
    %v428 = vadd.f32 %v427, %v302
    %v429 = vadd.f32 %v428, %v304
    %v430 = vrot.slane %v429, 4
    %v431 = vadd.f32 %v429, %v430
    %v432 = vrot.slane %v431, 2
    %v433 = vadd.f32 %v431, %v432
    %v434 = vrot.slane %v433, 1
    %v435 = vadd.f32 %v433, %v434
    %v436 = vadd.f32 %v57, %v59
    %v437 = vadd.f32 %v436, %v61
    %v438 = vadd.f32 %v437, %v63
    %v439 = vadd.f32 %v438, %v65
    %v440 = vadd.f32 %v439, %v67
    %v441 = vadd.f32 %v440, %v69
    %v442 = vadd.f32 %v441, %v71
    %v443 = vadd.f32 %v442, %v73
    %v444 = vadd.f32 %v443, %v75
    %v445 = vadd.f32 %v444, %v77
    %v446 = vadd.f32 %v445, %v79
    %v447 = vadd.f32 %v446, %v81
    %v448 = vadd.f32 %v447, %v83
    %v449 = vadd.f32 %v448, %v85
    %v450 = vadd.f32 %v449, %v87
    %v451 = vadd.f32 %v450, %v89
    %v452 = vadd.f32 %v451, %v91
    %v453 = vadd.f32 %v452, %v93
    %v454 = vadd.f32 %v453, %v95
    %v455 = vadd.f32 %v454, %v97
    %v456 = vadd.f32 %v455, %v99
    %v457 = vadd.f32 %v456, %v101
    %v458 = vadd.f32 %v457, %v103
    %v459 = vadd.f32 %v458, %v105
    %v460 = vadd.f32 %v459, %v107
    %v461 = vadd.f32 %v460, %v109
    %v462 = vadd.f32 %v461, %v111
    %v463 = vadd.f32 %v462, %v113
    %v464 = vadd.f32 %v463, %v115
    %v465 = vadd.f32 %v464, %v117
    %v466 = vadd.f32 %v465, %v119
    %v467 = vadd.f32 %v466, %v121
    %v468 = vadd.f32 %v467, %v123
    %v469 = vadd.f32 %v468, %v125
    %v470 = vadd.f32 %v469, %v127
    %v471 = vadd.f32 %v470, %v129
    %v472 = vadd.f32 %v471, %v131
    %v473 = vadd.f32 %v472, %v133
    %v474 = vadd.f32 %v473, %v135
    %v475 = vadd.f32 %v474, %v137
    %v476 = vadd.f32 %v475, %v139
    %v477 = vadd.f32 %v476, %v141
    %v478 = vadd.f32 %v477, %v143
    %v479 = vadd.f32 %v478, %v145
    %v480 = vadd.f32 %v479, %v147
    %v481 = vadd.f32 %v480, %v149
    %v482 = vadd.f32 %v481, %v151
    %v483 = vadd.f32 %v482, %v153
    %v484 = vadd.f32 %v483, %v155
    %v485 = vadd.f32 %v484, %v157
    %v486 = vadd.f32 %v485, %v159
    %v487 = vadd.f32 %v486, %v161
    %v488 = vadd.f32 %v487, %v163
    %v489 = vadd.f32 %v488, %v165
    %v490 = vadd.f32 %v489, %v167
    %v491 = vadd.f32 %v490, %v169
    %v492 = vadd.f32 %v491, %v171
    %v493 = vadd.f32 %v492, %v173
    %v494 = vadd.f32 %v493, %v175
    %v495 = vadd.f32 %v494, %v177
    %v496 = vadd.f32 %v495, %v179
    %v497 = vadd.f32 %v496, %v181
    %v498 = vadd.f32 %v497, %v183
    %v499 = vadd.f32 %v498, %v185
    %v500 = vadd.f32 %v499, %v187
    %v501 = vadd.f32 %v500, %v189
    %v502 = vadd.f32 %v501, %v191
    %v503 = vadd.f32 %v502, %v193
    %v504 = vadd.f32 %v503, %v195
    %v505 = vadd.f32 %v504, %v197
    %v506 = vadd.f32 %v505, %v199
    %v507 = vadd.f32 %v506, %v201
    %v508 = vadd.f32 %v507, %v203
    %v509 = vadd.f32 %v508, %v205
    %v510 = vadd.f32 %v509, %v207
    %v511 = vadd.f32 %v510, %v209
    %v512 = vadd.f32 %v511, %v211
    %v513 = vadd.f32 %v512, %v213
    %v514 = vadd.f32 %v513, %v215
    %v515 = vadd.f32 %v514, %v217
    %v516 = vadd.f32 %v515, %v219
    %v517 = vadd.f32 %v516, %v221
    %v518 = vadd.f32 %v517, %v223
    %v519 = vadd.f32 %v518, %v225
    %v520 = vadd.f32 %v519, %v227
    %v521 = vadd.f32 %v520, %v229
    %v522 = vadd.f32 %v521, %v231
    %v523 = vadd.f32 %v522, %v233
    %v524 = vadd.f32 %v523, %v235
    %v525 = vadd.f32 %v524, %v237
    %v526 = vadd.f32 %v525, %v239
    %v527 = vadd.f32 %v526, %v241
    %v528 = vadd.f32 %v527, %v243
    %v529 = vadd.f32 %v528, %v245
    %v530 = vadd.f32 %v529, %v247
    %v531 = vadd.f32 %v530, %v249
    %v532 = vadd.f32 %v531, %v251
    %v533 = vadd.f32 %v532, %v253
    %v534 = vadd.f32 %v533, %v255
    %v535 = vadd.f32 %v534, %v257
    %v536 = vadd.f32 %v535, %v259
    %v537 = vadd.f32 %v536, %v261
    %v538 = vadd.f32 %v537, %v263
    %v539 = vadd.f32 %v538, %v265
    %v540 = vadd.f32 %v539, %v267
    %v541 = vadd.f32 %v540, %v269
    %v542 = vadd.f32 %v541, %v271
    %v543 = vadd.f32 %v542, %v273
    %v544 = vadd.f32 %v543, %v275
    %v545 = vadd.f32 %v544, %v277
    %v546 = vadd.f32 %v545, %v279
    %v547 = vadd.f32 %v546, %v281
    %v548 = vadd.f32 %v547, %v283
    %v549 = vadd.f32 %v548, %v285
    %v550 = vadd.f32 %v549, %v287
    %v551 = vadd.f32 %v550, %v289
    %v552 = vadd.f32 %v551, %v291
    %v553 = vadd.f32 %v552, %v293
    %v554 = vadd.f32 %v553, %v295
    %v555 = vadd.f32 %v554, %v297
    %v556 = vadd.f32 %v555, %v299
    %v557 = vadd.f32 %v556, %v301
    %v558 = vadd.f32 %v557, %v303
    %v559 = vadd.f32 %v558, %v305
    %v560 = vrot.slane %v559, 4
    %v561 = vadd.f32 %v559, %v560
    %v562 = vrot.slane %v561, 2
    %v563 = vadd.f32 %v561, %v562
    %v564 = vrot.slane %v563, 1
    %v565 = vadd.f32 %v563, %v564
    %v566 = vmul.f32 %v435, 0.001
    %v567 = vmul.f32 %v565, 0.001
    %v568 = vld [vmem:[#allocation5] sm:$0xff]
    %v569 = vld [vmem:[#allocation5 + $0x8] sm:$0xff]
    %v570 = vld [vmem:[#allocation5 + $0x10] sm:$0xff]
    %v571 = vld [vmem:[#allocation5 + $0x18] sm:$0xff]
    %v572 = vmul.f32 %v568, %v566
    %v573 = vmul.f32 %v569, %v567
    %v574 = vmul.f32 %v570, %v566
    %v575 = vmul.f32 %v571, %v567
    %v576 = vadd.f32 %v572, %v573
    %577 = vadd.xlane.f32.xlu0 %v576
    %v578 = vpop.xlane.xlu0 %577
    %v579 = vadd.f32 %v574, %v575
    %580 = vadd.xlane.f32.xlu0 %v579
    %v581 = vpop.xlane.xlu0 %580
    %v582 = vmax.f32 %v578, 0.0
    %v583 = vmax.f32 %v581, 0.0
    %v584 = vld [vmem:[#allocation7] sm:$0xff]
    %v585 = vld [vmem:[#allocation7 + $0x8] sm:$0xff]
    %v586 = vld [vmem:[#allocation7 + $0x10] sm:$0xff]
    %v587 = vld [vmem:[#allocation7 + $0x18] sm:$0xff]
    %v588 = vmul.f32 %v584, %v582
    %v589 = vmul.f32 %v585, %v582
    %v590 = vmul.f32 %v586, %v583
    %v591 = vmul.f32 %v587, %v583
    %v592 = vadd.f32 %v588, %v590
    %v593 = vrot.slane %v592, 4
    %v594 = vadd.f32 %v592, %v593
    %v595 = vrot.slane %v594, 2
    %v596 = vadd.f32 %v594, %v595
    %v597 = vrot.slane %v596, 1
    %v598 = vadd.f32 %v596, %v597
    %v599 = vadd.f32 %v589, %v591
    %v600 = vrot.slane %v599, 4
    %v601 = vadd.f32 %v599, %v600
    %v602 = vrot.slane %v601, 2
    %v603 = vadd.f32 %v601, %v602
    %v604 = vrot.slane %v603, 1
    %v605 = vadd.f32 %v603, %v604
    %v606 = vxor.u32 %v598, 2147483648
    %v607 = vxor.u32 %v605, 2147483648
    %v608 = vmul.f32 %v606, 1.442695
    %v609 = vpow.pop %v608
    %v610 = vmul.f32 %v607, 1.442695
    %v611 = vpow.pop %v610
    %v612 = vadd.f32 %v609, 1.0
    %v613 = vadd.f32 %v611, 1.0
    %v614 = vrcp.pop %v612
    %v615 = vmul.f32 1.0, %v614
    %v616 = vrcp.pop %v613
    %v617 = vmul.f32 1.0, %v616
    %v618 = vmul.f32 %v56, %v615
    %v619 = vmul.f32 %v57, %v617
    %v620 = vmul.f32 %v58, %v615
    %v621 = vmul.f32 %v59, %v617
    %v622 = vmul.f32 %v60, %v615
    %v623 = vmul.f32 %v61, %v617
    %v624 = vmul.f32 %v62, %v615
    %v625 = vmul.f32 %v63, %v617
    %v626 = vmul.f32 %v64, %v615
    %v627 = vmul.f32 %v65, %v617
    %v628 = vmul.f32 %v66, %v615
    %v629 = vmul.f32 %v67, %v617
    %v630 = vmul.f32 %v68, %v615
    %v631 = vmul.f32 %v69, %v617
    %v632 = vmul.f32 %v70, %v615
    %v633 = vmul.f32 %v71, %v617
    %v634 = vmul.f32 %v72, %v615
    %v635 = vmul.f32 %v73, %v617
    %v636 = vmul.f32 %v74, %v615
    %v637 = vmul.f32 %v75, %v617
    %v638 = vmul.f32 %v76, %v615
    %v639 = vmul.f32 %v77, %v617
    %v640 = vmul.f32 %v78, %v615
    %v641 = vmul.f32 %v79, %v617
    %v642 = vmul.f32 %v80, %v615
    %v643 = vmul.f32 %v81, %v617
    %v644 = vmul.f32 %v82, %v615
    %v645 = vmul.f32 %v83, %v617
    %v646 = vmul.f32 %v84, %v615
    %v647 = vmul.f32 %v85, %v617
    %v648 = vmul.f32 %v86, %v615
    %v649 = vmul.f32 %v87, %v617
    %v650 = vmul.f32 %v88, %v615
    %v651 = vmul.f32 %v89, %v617
    %v652 = vmul.f32 %v90, %v615
    %v653 = vmul.f32 %v91, %v617
    %v654 = vmul.f32 %v92, %v615
    %v655 = vmul.f32 %v93, %v617
    %v656 = vmul.f32 %v94, %v615
    %v657 = vmul.f32 %v95, %v617
    %v658 = vmul.f32 %v96, %v615
    %v659 = vmul.f32 %v97, %v617
    %v660 = vmul.f32 %v98, %v615
    %v661 = vmul.f32 %v99, %v617
    %v662 = vmul.f32 %v100, %v615
    %v663 = vmul.f32 %v101, %v617
    %v664 = vmul.f32 %v102, %v615
    %v665 = vmul.f32 %v103, %v617
    %v666 = vmul.f32 %v104, %v615
    %v667 = vmul.f32 %v105, %v617
    %v668 = vmul.f32 %v106, %v615
    %v669 = vmul.f32 %v107, %v617
    %v670 = vmul.f32 %v108, %v615
    %v671 = vmul.f32 %v109, %v617
    %v672 = vmul.f32 %v110, %v615
    %v673 = vmul.f32 %v111, %v617
    %v674 = vmul.f32 %v112, %v615
    %v675 = vmul.f32 %v113, %v617
    %v676 = vmul.f32 %v114, %v615
    %v677 = vmul.f32 %v115, %v617
    %v678 = vmul.f32 %v116, %v615
    %v679 = vmul.f32 %v117, %v617
    %v680 = vmul.f32 %v118, %v615
    %v681 = vmul.f32 %v119, %v617
    %v682 = vmul.f32 %v120, %v615
    %v683 = vmul.f32 %v121, %v617
    %v684 = vmul.f32 %v122, %v615
    %v685 = vmul.f32 %v123, %v617
    %v686 = vmul.f32 %v124, %v615
    %v687 = vmul.f32 %v125, %v617
    %v688 = vmul.f32 %v126, %v615
    %v689 = vmul.f32 %v127, %v617
    %v690 = vmul.f32 %v128, %v615
    %v691 = vmul.f32 %v129, %v617
    %v692 = vmul.f32 %v130, %v615
    %v693 = vmul.f32 %v131, %v617
    %v694 = vmul.f32 %v132, %v615
    %v695 = vmul.f32 %v133, %v617
    %v696 = vmul.f32 %v134, %v615
    %v697 = vmul.f32 %v135, %v617
    %v698 = vmul.f32 %v136, %v615
    %v699 = vmul.f32 %v137, %v617
    %v700 = vmul.f32 %v138, %v615
    %v701 = vmul.f32 %v139, %v617
    %v702 = vmul.f32 %v140, %v615
    %v703 = vmul.f32 %v141, %v617
    %v704 = vmul.f32 %v142, %v615
    %v705 = vmul.f32 %v143, %v617
    %v706 = vmul.f32 %v144, %v615
    %v707 = vmul.f32 %v145, %v617
    %v708 = vmul.f32 %v146, %v615
    %v709 = vmul.f32 %v147, %v617
    %v710 = vmul.f32 %v148, %v615
    %v711 = vmul.f32 %v149, %v617
    %v712 = vmul.f32 %v150, %v615
    %v713 = vmul.f32 %v151, %v617
    %v714 = vmul.f32 %v152, %v615
    %v715 = vmul.f32 %v153, %v617
    %v716 = vmul.f32 %v154, %v615
    %v717 = vmul.f32 %v155, %v617
    %v718 = vmul.f32 %v156, %v615
    %v719 = vmul.f32 %v157, %v617
    %v720 = vmul.f32 %v158, %v615
    %v721 = vmul.f32 %v159, %v617
    %v722 = vmul.f32 %v160, %v615
    %v723 = vmul.f32 %v161, %v617
    %v724 = vmul.f32 %v162, %v615
    %v725 = vmul.f32 %v163, %v617
    %v726 = vmul.f32 %v164, %v615
    %v727 = vmul.f32 %v165, %v617
    %v728 = vmul.f32 %v166, %v615
    %v729 = vmul.f32 %v167, %v617
    %v730 = vmul.f32 %v168, %v615
    %v731 = vmul.f32 %v169, %v617
    %v732 = vmul.f32 %v170, %v615
    %v733 = vmul.f32 %v171, %v617
    %v734 = vmul.f32 %v172, %v615
    %v735 = vmul.f32 %v173, %v617
    %v736 = vmul.f32 %v174, %v615
    %v737 = vmul.f32 %v175, %v617
    %v738 = vmul.f32 %v176, %v615
    %v739 = vmul.f32 %v177, %v617
    %v740 = vmul.f32 %v178, %v615
    %v741 = vmul.f32 %v179, %v617
    %v742 = vmul.f32 %v180, %v615
    %v743 = vmul.f32 %v181, %v617
    %v744 = vmul.f32 %v182, %v615
    %v745 = vmul.f32 %v183, %v617
    %v746 = vmul.f32 %v184, %v615
    %v747 = vmul.f32 %v185, %v617
    %v748 = vmul.f32 %v186, %v615
    %v749 = vmul.f32 %v187, %v617
    %v750 = vmul.f32 %v188, %v615
    %v751 = vmul.f32 %v189, %v617
    %v752 = vmul.f32 %v190, %v615
    %v753 = vmul.f32 %v191, %v617
    %v754 = vmul.f32 %v192, %v615
    %v755 = vmul.f32 %v193, %v617
    %v756 = vmul.f32 %v194, %v615
    %v757 = vmul.f32 %v195, %v617
    %v758 = vmul.f32 %v196, %v615
    %v759 = vmul.f32 %v197, %v617
    %v760 = vmul.f32 %v198, %v615
    %v761 = vmul.f32 %v199, %v617
    %v762 = vmul.f32 %v200, %v615
    %v763 = vmul.f32 %v201, %v617
    %v764 = vmul.f32 %v202, %v615
    %v765 = vmul.f32 %v203, %v617
    %v766 = vmul.f32 %v204, %v615
    %v767 = vmul.f32 %v205, %v617
    %v768 = vmul.f32 %v206, %v615
    %v769 = vmul.f32 %v207, %v617
    %v770 = vmul.f32 %v208, %v615
    %v771 = vmul.f32 %v209, %v617
    %v772 = vmul.f32 %v210, %v615
    %v773 = vmul.f32 %v211, %v617
    %v774 = vmul.f32 %v212, %v615
    %v775 = vmul.f32 %v213, %v617
    %v776 = vmul.f32 %v214, %v615
    %v777 = vmul.f32 %v215, %v617
    %v778 = vmul.f32 %v216, %v615
    %v779 = vmul.f32 %v217, %v617
    %v780 = vmul.f32 %v218, %v615
    %v781 = vmul.f32 %v219, %v617
    %v782 = vmul.f32 %v220, %v615
    %v783 = vmul.f32 %v221, %v617
    %v784 = vmul.f32 %v222, %v615
    %v785 = vmul.f32 %v223, %v617
    %v786 = vmul.f32 %v224, %v615
    %v787 = vmul.f32 %v225, %v617
    %v788 = vmul.f32 %v226, %v615
    %v789 = vmul.f32 %v227, %v617
    %v790 = vmul.f32 %v228, %v615
    %v791 = vmul.f32 %v229, %v617
    %v792 = vmul.f32 %v230, %v615
    %v793 = vmul.f32 %v231, %v617
    %v794 = vmul.f32 %v232, %v615
    %v795 = vmul.f32 %v233, %v617
    %v796 = vmul.f32 %v234, %v615
    %v797 = vmul.f32 %v235, %v617
    %v798 = vmul.f32 %v236, %v615
    %v799 = vmul.f32 %v237, %v617
    %v800 = vmul.f32 %v238, %v615
    %v801 = vmul.f32 %v239, %v617
    %v802 = vmul.f32 %v240, %v615
    %v803 = vmul.f32 %v241, %v617
    %v804 = vmul.f32 %v242, %v615
    %v805 = vmul.f32 %v243, %v617
    %v806 = vmul.f32 %v244, %v615
    %v807 = vmul.f32 %v245, %v617
    %v808 = vmul.f32 %v246, %v615
    %v809 = vmul.f32 %v247, %v617
    %v810 = vmul.f32 %v248, %v615
    %v811 = vmul.f32 %v249, %v617
    %v812 = vmul.f32 %v250, %v615
    %v813 = vmul.f32 %v251, %v617
    %v814 = vmul.f32 %v252, %v615
    %v815 = vmul.f32 %v253, %v617
    %v816 = vmul.f32 %v254, %v615
    %v817 = vmul.f32 %v255, %v617
    %v818 = vmul.f32 %v256, %v615
    %v819 = vmul.f32 %v257, %v617
    %v820 = vmul.f32 %v258, %v615
    %v821 = vmul.f32 %v259, %v617
    %v822 = vmul.f32 %v260, %v615
    %v823 = vmul.f32 %v261, %v617
    %v824 = vmul.f32 %v262, %v615
    %v825 = vmul.f32 %v263, %v617
    %v826 = vmul.f32 %v264, %v615
    %v827 = vmul.f32 %v265, %v617
    %v828 = vmul.f32 %v266, %v615
    %v829 = vmul.f32 %v267, %v617
    %v830 = vmul.f32 %v268, %v615
    %v831 = vmul.f32 %v269, %v617
    %v832 = vmul.f32 %v270, %v615
    %v833 = vmul.f32 %v271, %v617
    %v834 = vmul.f32 %v272, %v615
    %v835 = vmul.f32 %v273, %v617
    %v836 = vmul.f32 %v274, %v615
    %v837 = vmul.f32 %v275, %v617
    %v838 = vmul.f32 %v276, %v615
    %v839 = vmul.f32 %v277, %v617
    %v840 = vmul.f32 %v278, %v615
    %v841 = vmul.f32 %v279, %v617
    %v842 = vmul.f32 %v280, %v615
    %v843 = vmul.f32 %v281, %v617
    %v844 = vmul.f32 %v282, %v615
    %v845 = vmul.f32 %v283, %v617
    %v846 = vmul.f32 %v284, %v615
    %v847 = vmul.f32 %v285, %v617
    %v848 = vmul.f32 %v286, %v615
    %v849 = vmul.f32 %v287, %v617
    %v850 = vmul.f32 %v288, %v615
    %v851 = vmul.f32 %v289, %v617
    %v852 = vmul.f32 %v290, %v615
    %v853 = vmul.f32 %v291, %v617
    %v854 = vmul.f32 %v292, %v615
    %v855 = vmul.f32 %v293, %v617
    %v856 = vmul.f32 %v294, %v615
    %v857 = vmul.f32 %v295, %v617
    %v858 = vmul.f32 %v296, %v615
    %v859 = vmul.f32 %v297, %v617
    %v860 = vmul.f32 %v298, %v615
    %v861 = vmul.f32 %v299, %v617
    %v862 = vmul.f32 %v300, %v615
    %v863 = vmul.f32 %v301, %v617
    %v864 = vmul.f32 %v302, %v615
    %v865 = vmul.f32 %v303, %v617
    %v866 = vmul.f32 %v304, %v615
    %v867 = vmul.f32 %v305, %v617
    %868 = vst [vmem:[#allocation8] sm:$0xff] %v618
    %869 = vst [vmem:[#allocation8 + $0x8] sm:$0xff] %v619
    %870 = vst [vmem:[#allocation8 + $0x10] sm:$0xff] %v620
    %871 = vst [vmem:[#allocation8 + $0x18] sm:$0xff] %v621
    %872 = vst [vmem:[#allocation8 + $0x20] sm:$0xff] %v622
    %873 = vst [vmem:[#allocation8 + $0x28] sm:$0xff] %v623
    %874 = vst [vmem:[#allocation8 + $0x30] sm:$0xff] %v624
    %875 = vst [vmem:[#allocation8 + $0x38] sm:$0xff] %v625
    %876 = vst [vmem:[#allocation8 + $0x40] sm:$0xff] %v626
    %877 = vst [vmem:[#allocation8 + $0x48] sm:$0xff] %v627
    %878 = vst [vmem:[#allocation8 + $0x50] sm:$0xff] %v628
    %879 = vst [vmem:[#allocation8 + $0x58] sm:$0xff] %v629
    %880 = vst [vmem:[#allocation8 + $0x60] sm:$0xff] %v630
    %881 = vst [vmem:[#allocation8 + $0x68] sm:$0xff] %v631
    %882 = vst [vmem:[#allocation8 + $0x70] sm:$0xff] %v632
    %883 = vst [vmem:[#allocation8 + $0x78] sm:$0xff] %v633
    %884 = vst [vmem:[#allocation8 + $0x80] sm:$0xff] %v634
    %885 = vst [vmem:[#allocation8 + $0x88] sm:$0xff] %v635
    %886 = vst [vmem:[#allocation8 + $0x90] sm:$0xff] %v636
    %887 = vst [vmem:[#allocation8 + $0x98] sm:$0xff] %v637
    %888 = vst [vmem:[#allocation8 + $0xa0] sm:$0xff] %v638
    %889 = vst [vmem:[#allocation8 + $0xa8] sm:$0xff] %v639
    %890 = vst [vmem:[#allocation8 + $0xb0] sm:$0xff] %v640
    %891 = vst [vmem:[#allocation8 + $0xb8] sm:$0xff] %v641
    %892 = vst [vmem:[#allocation8 + $0xc0] sm:$0xff] %v642
    %893 = vst [vmem:[#allocation8 + $0xc8] sm:$0xff] %v643
    %894 = vst [vmem:[#allocation8 + $0xd0] sm:$0xff] %v644
    %895 = vst [vmem:[#allocation8 + $0xd8] sm:$0xff] %v645
    %896 = vst [vmem:[#allocation8 + $0xe0] sm:$0xff] %v646
    %897 = vst [vmem:[#allocation8 + $0xe8] sm:$0xff] %v647
    %898 = vst [vmem:[#allocation8 + $0xf0] sm:$0xff] %v648
    %899 = vst [vmem:[#allocation8 + $0xf8] sm:$0xff] %v649
    %900 = vst [vmem:[#allocation8 + $0x100] sm:$0xff] %v650
    %901 = vst [vmem:[#allocation8 + $0x108] sm:$0xff] %v651
    %902 = vst [vmem:[#allocation8 + $0x110] sm:$0xff] %v652
    %903 = vst [vmem:[#allocation8 + $0x118] sm:$0xff] %v653
    %904 = vst [vmem:[#allocation8 + $0x120] sm:$0xff] %v654
    %905 = vst [vmem:[#allocation8 + $0x128] sm:$0xff] %v655
    %906 = vst [vmem:[#allocation8 + $0x130] sm:$0xff] %v656
    %907 = vst [vmem:[#allocation8 + $0x138] sm:$0xff] %v657
    %908 = vst [vmem:[#allocation8 + $0x140] sm:$0xff] %v658
    %909 = vst [vmem:[#allocation8 + $0x148] sm:$0xff] %v659
    %910 = vst [vmem:[#allocation8 + $0x150] sm:$0xff] %v660
    %911 = vst [vmem:[#allocation8 + $0x158] sm:$0xff] %v661
    %912 = vst [vmem:[#allocation8 + $0x160] sm:$0xff] %v662
    %913 = vst [vmem:[#allocation8 + $0x168] sm:$0xff] %v663
    %914 = vst [vmem:[#allocation8 + $0x170] sm:$0xff] %v664
    %915 = vst [vmem:[#allocation8 + $0x178] sm:$0xff] %v665
    %916 = vst [vmem:[#allocation8 + $0x180] sm:$0xff] %v666
    %917 = vst [vmem:[#allocation8 + $0x188] sm:$0xff] %v667
    %918 = vst [vmem:[#allocation8 + $0x190] sm:$0xff] %v668
    %919 = vst [vmem:[#allocation8 + $0x198] sm:$0xff] %v669
    %920 = vst [vmem:[#allocation8 + $0x1a0] sm:$0xff] %v670
    %921 = vst [vmem:[#allocation8 + $0x1a8] sm:$0xff] %v671
    %922 = vst [vmem:[#allocation8 + $0x1b0] sm:$0xff] %v672
    %923 = vst [vmem:[#allocation8 + $0x1b8] sm:$0xff] %v673
    %924 = vst [vmem:[#allocation8 + $0x1c0] sm:$0xff] %v674
    %925 = vst [vmem:[#allocation8 + $0x1c8] sm:$0xff] %v675
    %926 = vst [vmem:[#allocation8 + $0x1d0] sm:$0xff] %v676
    %927 = vst [vmem:[#allocation8 + $0x1d8] sm:$0xff] %v677
    %928 = vst [vmem:[#allocation8 + $0x1e0] sm:$0xff] %v678
    %929 = vst [vmem:[#allocation8 + $0x1e8] sm:$0xff] %v679
    %930 = vst [vmem:[#allocation8 + $0x1f0] sm:$0xff] %v680
    %931 = vst [vmem:[#allocation8 + $0x1f8] sm:$0xff] %v681
    %932 = vst [vmem:[#allocation8 + $0x200] sm:$0xff] %v682
    %933 = vst [vmem:[#allocation8 + $0x208] sm:$0xff] %v683
    %934 = vst [vmem:[#allocation8 + $0x210] sm:$0xff] %v684
    %935 = vst [vmem:[#allocation8 + $0x218] sm:$0xff] %v685
    %936 = vst [vmem:[#allocation8 + $0x220] sm:$0xff] %v686
    %937 = vst [vmem:[#allocation8 + $0x228] sm:$0xff] %v687
    %938 = vst [vmem:[#allocation8 + $0x230] sm:$0xff] %v688
    %939 = vst [vmem:[#allocation8 + $0x238] sm:$0xff] %v689
    %940 = vst [vmem:[#allocation8 + $0x240] sm:$0xff] %v690
    %941 = vst [vmem:[#allocation8 + $0x248] sm:$0xff] %v691
    %942 = vst [vmem:[#allocation8 + $0x250] sm:$0xff] %v692
    %943 = vst [vmem:[#allocation8 + $0x258] sm:$0xff] %v693
    %944 = vst [vmem:[#allocation8 + $0x260] sm:$0xff] %v694
    %945 = vst [vmem:[#allocation8 + $0x268] sm:$0xff] %v695
    %946 = vst [vmem:[#allocation8 + $0x270] sm:$0xff] %v696
    %947 = vst [vmem:[#allocation8 + $0x278] sm:$0xff] %v697
    %948 = vst [vmem:[#allocation8 + $0x280] sm:$0xff] %v698
    %949 = vst [vmem:[#allocation8 + $0x288] sm:$0xff] %v699
    %950 = vst [vmem:[#allocation8 + $0x290] sm:$0xff] %v700
    %951 = vst [vmem:[#allocation8 + $0x298] sm:$0xff] %v701
    %952 = vst [vmem:[#allocation8 + $0x2a0] sm:$0xff] %v702
    %953 = vst [vmem:[#allocation8 + $0x2a8] sm:$0xff] %v703
    %954 = vst [vmem:[#allocation8 + $0x2b0] sm:$0xff] %v704
    %955 = vst [vmem:[#allocation8 + $0x2b8] sm:$0xff] %v705
    %956 = vst [vmem:[#allocation8 + $0x2c0] sm:$0xff] %v706
    %957 = vst [vmem:[#allocation8 + $0x2c8] sm:$0xff] %v707
    %958 = vst [vmem:[#allocation8 + $0x2d0] sm:$0xff] %v708
    %959 = vst [vmem:[#allocation8 + $0x2d8] sm:$0xff] %v709
    %960 = vst [vmem:[#allocation8 + $0x2e0] sm:$0xff] %v710
    %961 = vst [vmem:[#allocation8 + $0x2e8] sm:$0xff] %v711
    %962 = vst [vmem:[#allocation8 + $0x2f0] sm:$0xff] %v712
    %963 = vst [vmem:[#allocation8 + $0x2f8] sm:$0xff] %v713
    %964 = vst [vmem:[#allocation8 + $0x300] sm:$0xff] %v714
    %965 = vst [vmem:[#allocation8 + $0x308] sm:$0xff] %v715
    %966 = vst [vmem:[#allocation8 + $0x310] sm:$0xff] %v716
    %967 = vst [vmem:[#allocation8 + $0x318] sm:$0xff] %v717
    %968 = vst [vmem:[#allocation8 + $0x320] sm:$0xff] %v718
    %969 = vst [vmem:[#allocation8 + $0x328] sm:$0xff] %v719
    %970 = vst [vmem:[#allocation8 + $0x330] sm:$0xff] %v720
    %971 = vst [vmem:[#allocation8 + $0x338] sm:$0xff] %v721
    %972 = vst [vmem:[#allocation8 + $0x340] sm:$0xff] %v722
    %973 = vst [vmem:[#allocation8 + $0x348] sm:$0xff] %v723
    %974 = vst [vmem:[#allocation8 + $0x350] sm:$0xff] %v724
    %975 = vst [vmem:[#allocation8 + $0x358] sm:$0xff] %v725
    %976 = vst [vmem:[#allocation8 + $0x360] sm:$0xff] %v726
    %977 = vst [vmem:[#allocation8 + $0x368] sm:$0xff] %v727
    %978 = vst [vmem:[#allocation8 + $0x370] sm:$0xff] %v728
    %979 = vst [vmem:[#allocation8 + $0x378] sm:$0xff] %v729
    %980 = vst [vmem:[#allocation8 + $0x380] sm:$0xff] %v730
    %981 = vst [vmem:[#allocation8 + $0x388] sm:$0xff] %v731
    %982 = vst [vmem:[#allocation8 + $0x390] sm:$0xff] %v732
    %983 = vst [vmem:[#allocation8 + $0x398] sm:$0xff] %v733
    %984 = vst [vmem:[#allocation8 + $0x3a0] sm:$0xff] %v734
    %985 = vst [vmem:[#allocation8 + $0x3a8] sm:$0xff] %v735
    %986 = vst [vmem:[#allocation8 + $0x3b0] sm:$0xff] %v736
    %987 = vst [vmem:[#allocation8 + $0x3b8] sm:$0xff] %v737
    %988 = vst [vmem:[#allocation8 + $0x3c0] sm:$0xff] %v738
    %989 = vst [vmem:[#allocation8 + $0x3c8] sm:$0xff] %v739
    %990 = vst [vmem:[#allocation8 + $0x3d0] sm:$0xff] %v740
    %991 = vst [vmem:[#allocation8 + $0x3d8] sm:$0xff] %v741
    %992 = vst [vmem:[#allocation8 + $0x3e0] sm:$0xff] %v742
    %993 = vst [vmem:[#allocation8 + $0x3e8] sm:$0xff] %v743
    %994 = vst [vmem:[#allocation8 + $0x3f0] sm:$0xff] %v744
    %995 = vst [vmem:[#allocation8 + $0x3f8] sm:$0xff] %v745
    %996 = vst [vmem:[#allocation8 + $0x400] sm:$0xff] %v746
    %997 = vst [vmem:[#allocation8 + $0x408] sm:$0xff] %v747
    %998 = vst [vmem:[#allocation8 + $0x410] sm:$0xff] %v748
    %999 = vst [vmem:[#allocation8 + $0x418] sm:$0xff] %v749
    %1000 = vst [vmem:[#allocation8 + $0x420] sm:$0xff] %v750
    %1001 = vst [vmem:[#allocation8 + $0x428] sm:$0xff] %v751
    %1002 = vst [vmem:[#allocation8 + $0x430] sm:$0xff] %v752
    %1003 = vst [vmem:[#allocation8 + $0x438] sm:$0xff] %v753
    %1004 = vst [vmem:[#allocation8 + $0x440] sm:$0xff] %v754
    %1005 = vst [vmem:[#allocation8 + $0x448] sm:$0xff] %v755
    %1006 = vst [vmem:[#allocation8 + $0x450] sm:$0xff] %v756
    %1007 = vst [vmem:[#allocation8 + $0x458] sm:$0xff] %v757
    %1008 = vst [vmem:[#allocation8 + $0x460] sm:$0xff] %v758
    %1009 = vst [vmem:[#allocation8 + $0x468] sm:$0xff] %v759
    %1010 = vst [vmem:[#allocation8 + $0x470] sm:$0xff] %v760
    %1011 = vst [vmem:[#allocation8 + $0x478] sm:$0xff] %v761
    %1012 = vst [vmem:[#allocation8 + $0x480] sm:$0xff] %v762
    %1013 = vst [vmem:[#allocation8 + $0x488] sm:$0xff] %v763
    %1014 = vst [vmem:[#allocation8 + $0x490] sm:$0xff] %v764
    %1015 = vst [vmem:[#allocation8 + $0x498] sm:$0xff] %v765
    %1016 = vst [vmem:[#allocation8 + $0x4a0] sm:$0xff] %v766
    %1017 = vst [vmem:[#allocation8 + $0x4a8] sm:$0xff] %v767
    %1018 = vst [vmem:[#allocation8 + $0x4b0] sm:$0xff] %v768
    %1019 = vst [vmem:[#allocation8 + $0x4b8] sm:$0xff] %v769
    %1020 = vst [vmem:[#allocation8 + $0x4c0] sm:$0xff] %v770
    %1021 = vst [vmem:[#allocation8 + $0x4c8] sm:$0xff] %v771
    %1022 = vst [vmem:[#allocation8 + $0x4d0] sm:$0xff] %v772
    %1023 = vst [vmem:[#allocation8 + $0x4d8] sm:$0xff] %v773
    %1024 = vst [vmem:[#allocation8 + $0x4e0] sm:$0xff] %v774
    %1025 = vst [vmem:[#allocation8 + $0x4e8] sm:$0xff] %v775
    %1026 = vst [vmem:[#allocation8 + $0x4f0] sm:$0xff] %v776
    %1027 = vst [vmem:[#allocation8 + $0x4f8] sm:$0xff] %v777
    %1028 = vst [vmem:[#allocation8 + $0x500] sm:$0xff] %v778
    %1029 = vst [vmem:[#allocation8 + $0x508] sm:$0xff] %v779
    %1030 = vst [vmem:[#allocation8 + $0x510] sm:$0xff] %v780
    %1031 = vst [vmem:[#allocation8 + $0x518] sm:$0xff] %v781
    %1032 = vst [vmem:[#allocation8 + $0x520] sm:$0xff] %v782
    %1033 = vst [vmem:[#allocation8 + $0x528] sm:$0xff] %v783
    %1034 = vst [vmem:[#allocation8 + $0x530] sm:$0xff] %v784
    %1035 = vst [vmem:[#allocation8 + $0x538] sm:$0xff] %v785
    %1036 = vst [vmem:[#allocation8 + $0x540] sm:$0xff] %v786
    %1037 = vst [vmem:[#allocation8 + $0x548] sm:$0xff] %v787
    %1038 = vst [vmem:[#allocation8 + $0x550] sm:$0xff] %v788
    %1039 = vst [vmem:[#allocation8 + $0x558] sm:$0xff] %v789
    %1040 = vst [vmem:[#allocation8 + $0x560] sm:$0xff] %v790
    %1041 = vst [vmem:[#allocation8 + $0x568] sm:$0xff] %v791
    %1042 = vst [vmem:[#allocation8 + $0x570] sm:$0xff] %v792
    %1043 = vst [vmem:[#allocation8 + $0x578] sm:$0xff] %v793
    %1044 = vst [vmem:[#allocation8 + $0x580] sm:$0xff] %v794
    %1045 = vst [vmem:[#allocation8 + $0x588] sm:$0xff] %v795
    %1046 = vst [vmem:[#allocation8 + $0x590] sm:$0xff] %v796
    %1047 = vst [vmem:[#allocation8 + $0x598] sm:$0xff] %v797
    %1048 = vst [vmem:[#allocation8 + $0x5a0] sm:$0xff] %v798
    %1049 = vst [vmem:[#allocation8 + $0x5a8] sm:$0xff] %v799
    %1050 = vst [vmem:[#allocation8 + $0x5b0] sm:$0xff] %v800
    %1051 = vst [vmem:[#allocation8 + $0x5b8] sm:$0xff] %v801
    %1052 = vst [vmem:[#allocation8 + $0x5c0] sm:$0xff] %v802
    %1053 = vst [vmem:[#allocation8 + $0x5c8] sm:$0xff] %v803
    %1054 = vst [vmem:[#allocation8 + $0x5d0] sm:$0xff] %v804
    %1055 = vst [vmem:[#allocation8 + $0x5d8] sm:$0xff] %v805
    %1056 = vst [vmem:[#allocation8 + $0x5e0] sm:$0xff] %v806
    %1057 = vst [vmem:[#allocation8 + $0x5e8] sm:$0xff] %v807
    %1058 = vst [vmem:[#allocation8 + $0x5f0] sm:$0xff] %v808
    %1059 = vst [vmem:[#allocation8 + $0x5f8] sm:$0xff] %v809
    %1060 = vst [vmem:[#allocation8 + $0x600] sm:$0xff] %v810
    %1061 = vst [vmem:[#allocation8 + $0x608] sm:$0xff] %v811
    %1062 = vst [vmem:[#allocation8 + $0x610] sm:$0xff] %v812
    %1063 = vst [vmem:[#allocation8 + $0x618] sm:$0xff] %v813
    %1064 = vst [vmem:[#allocation8 + $0x620] sm:$0xff] %v814
    %1065 = vst [vmem:[#allocation8 + $0x628] sm:$0xff] %v815
    %1066 = vst [vmem:[#allocation8 + $0x630] sm:$0xff] %v816
    %1067 = vst [vmem:[#allocation8 + $0x638] sm:$0xff] %v817
    %1068 = vst [vmem:[#allocation8 + $0x640] sm:$0xff] %v818
    %1069 = vst [vmem:[#allocation8 + $0x648] sm:$0xff] %v819
    %1070 = vst [vmem:[#allocation8 + $0x650] sm:$0xff] %v820
    %1071 = vst [vmem:[#allocation8 + $0x658] sm:$0xff] %v821
    %1072 = vst [vmem:[#allocation8 + $0x660] sm:$0xff] %v822
    %1073 = vst [vmem:[#allocation8 + $0x668] sm:$0xff] %v823
    %1074 = vst [vmem:[#allocation8 + $0x670] sm:$0xff] %v824
    %1075 = vst [vmem:[#allocation8 + $0x678] sm:$0xff] %v825
    %1076 = vst [vmem:[#allocation8 + $0x680] sm:$0xff] %v826
    %1077 = vst [vmem:[#allocation8 + $0x688] sm:$0xff] %v827
    %1078 = vst [vmem:[#allocation8 + $0x690] sm:$0xff] %v828
    %1079 = vst [vmem:[#allocation8 + $0x698] sm:$0xff] %v829
    %1080 = vst [vmem:[#allocation8 + $0x6a0] sm:$0xff] %v830
    %1081 = vst [vmem:[#allocation8 + $0x6a8] sm:$0xff] %v831
    %1082 = vst [vmem:[#allocation8 + $0x6b0] sm:$0xff] %v832
    %1083 = vst [vmem:[#allocation8 + $0x6b8] sm:$0xff] %v833
    %1084 = vst [vmem:[#allocation8 + $0x6c0] sm:$0xff] %v834
    %1085 = vst [vmem:[#allocation8 + $0x6c8] sm:$0xff] %v835
    %1086 = vst [vmem:[#allocation8 + $0x6d0] sm:$0xff] %v836
    %1087 = vst [vmem:[#allocation8 + $0x6d8] sm:$0xff] %v837
    %1088 = vst [vmem:[#allocation8 + $0x6e0] sm:$0xff] %v838
    %1089 = vst [vmem:[#allocation8 + $0x6e8] sm:$0xff] %v839
    %1090 = vst [vmem:[#allocation8 + $0x6f0] sm:$0xff] %v840
    %1091 = vst [vmem:[#allocation8 + $0x6f8] sm:$0xff] %v841
    %1092 = vst [vmem:[#allocation8 + $0x700] sm:$0xff] %v842
    %1093 = vst [vmem:[#allocation8 + $0x708] sm:$0xff] %v843
    %1094 = vst [vmem:[#allocation8 + $0x710] sm:$0xff] %v844
    %1095 = vst [vmem:[#allocation8 + $0x718] sm:$0xff] %v845
    %1096 = vst [vmem:[#allocation8 + $0x720] sm:$0xff] %v846
    %1097 = vst [vmem:[#allocation8 + $0x728] sm:$0xff] %v847
    %1098 = vst [vmem:[#allocation8 + $0x730] sm:$0xff] %v848
    %1099 = vst [vmem:[#allocation8 + $0x738] sm:$0xff] %v849
    %1100 = vst [vmem:[#allocation8 + $0x740] sm:$0xff] %v850
    %1101 = vst [vmem:[#allocation8 + $0x748] sm:$0xff] %v851
    %1102 = vst [vmem:[#allocation8 + $0x750] sm:$0xff] %v852
    %1103 = vst [vmem:[#allocation8 + $0x758] sm:$0xff] %v853
    %1104 = vst [vmem:[#allocation8 + $0x760] sm:$0xff] %v854
    %1105 = vst [vmem:[#allocation8 + $0x768] sm:$0xff] %v855
    %1106 = vst [vmem:[#allocation8 + $0x770] sm:$0xff] %v856
    %1107 = vst [vmem:[#allocation8 + $0x778] sm:$0xff] %v857
    %1108 = vst [vmem:[#allocation8 + $0x780] sm:$0xff] %v858
    %1109 = vst [vmem:[#allocation8 + $0x788] sm:$0xff] %v859
    %1110 = vst [vmem:[#allocation8 + $0x790] sm:$0xff] %v860
    %1111 = vst [vmem:[#allocation8 + $0x798] sm:$0xff] %v861
    %1112 = vst [vmem:[#allocation8 + $0x7a0] sm:$0xff] %v862
    %1113 = vst [vmem:[#allocation8 + $0x7a8] sm:$0xff] %v863
    %1114 = vst [vmem:[#allocation8 + $0x7b0] sm:$0xff] %v864
    %1115 = vst [vmem:[#allocation8 + $0x7b8] sm:$0xff] %v865
    %1116 = vst [vmem:[#allocation8 + $0x7c0] sm:$0xff] %v866
    %1117 = vst [vmem:[#allocation8 + $0x7c8] sm:$0xff] %v867
    // Predicated region
    $region26: #{tpu_custom_call.1} parent=1 // pred_check
      _
    $region27: #{tpu_custom_call.1} parent=1 // pred_check_branch
      %1119 = sbr.rel (0) target = $region29
    $region28: #{tpu_custom_call.1} parent=1 // pred_region
      %s1121 = ssub.s32 32000, 32000
      %1122 = vsyncadd [#allocation4], %s1121
      %s1123 = sshll.u32 [#allocation8], 4
      %s1124 = int_to_ptr.vmem [resolvable:$true] %s1123
      %1129 = dma.vmem_to_hbm [thread:$0]  %s1124, 32000, %s3, [#allocation4], 256, 256, 16
    $region29: #{tpu_custom_call.1} parent=1 // pred_fallthru
      _
    // Predicated region
    $region30: #{tpu_custom_call.1} parent=1 // pred_check
      _
    $region31: #{tpu_custom_call.1} parent=1 // pred_check_branch
      %1131 = sbr.rel (0) target = $region33
    $region32: #{tpu_custom_call.1} parent=1 // pred_region
      %1132 = dma.done [#allocation4], 32000
    $region33: #{tpu_custom_call.1} parent=1 // pred_fallthru
      _
    %1133 = vsyncpa [#allocation3], 1
    %1134 = vsyncpa [#allocation6], 1
    %1135 = vsyncpa [#allocation4], 1

</llo_original>
